<compile_context>
chip_gen: v6e
topology: v6e:2x2x1
jax: 0.10.0
libtpu: 0.0.40
codegen_flags: <defaults>
</compile_context>

<pallas_src>
import jax
import jax.numpy as jnp
from jax.experimental import pallas as pl
from jax.experimental.pallas import tpu as pltpu


# -----------------------------------------------------------------------------
# helpers
# -----------------------------------------------------------------------------
def _round_up(x, m):
    return ((x + m - 1) // m) * m


def _choose_tile(dim, target, align):
    """Largest multiple of `align` that divides `dim` and is <= target.

    Falls back to the full dim (always a legal block size) when `dim` is small
    or not `align`-aligned.
    """
    if dim <= target or dim % align != 0:
        return dim
    t = (target // align) * align
    while t >= align:
        if dim % t == 0:
            return t
        t -= align
    return dim


# -----------------------------------------------------------------------------
# Kernel 1: y = SiLU(x) @ W + b   (fused activation + tiled matmul)
# -----------------------------------------------------------------------------
def silu_linear(x, w, b, *, tn_target=512, tk_target=512):
    """x: (B, K) f32, w: (K, M), b: (M,)  ->  (B, M) f32."""
    B, K = x.shape
    M = w.shape[1]
    tn = _choose_tile(M, tn_target, 128)
    tk = _choose_tile(K, tk_target, 128)
    nj, nk = M // tn, K // tk

    w_bf16 = w.astype(jnp.bfloat16)          # cast once (param-setup time in a real model)
    b2 = b.reshape(1, M).astype(jnp.float32)

    def kernel(x_ref, w_ref, b_ref, o_ref, acc_ref):
        k = pl.program_id(1)

        @pl.when(k == 0)
        def _():
            acc_ref[...] = jnp.zeros_like(acc_ref)

        xk = x_ref[...].astype(jnp.float32)
        xk = (xk * jax.nn.sigmoid(xk)).astype(jnp.bfloat16)   # fused SiLU: f32 math, bf16 MXU operand
        acc_ref[...] += jnp.dot(xk, w_ref[...],
                                preferred_element_type=jnp.float32)

        @pl.when(k == nk - 1)
        def _():
            o_ref[...] = (acc_ref[...] + b_ref[...]).astype(o_ref.dtype)

    return pl.pallas_call(
        kernel,
        out_shape=jax.ShapeDtypeStruct((B, M), jnp.float32),
        grid=(nj, nk),
        in_specs=[
            pl.BlockSpec((B, tk), lambda j, k: (0, k)),
            pl.BlockSpec((tk, tn), lambda j, k: (k, j)),
            pl.BlockSpec((1, tn), lambda j, k: (0, j)),
        ],
        out_specs=pl.BlockSpec((B, tn), lambda j, k: (0, j)),
        scratch_shapes=[pltpu.VMEM((B, tn), jnp.float32)],
        compiler_params=pltpu.CompilerParams(
            dimension_semantics=("parallel", "arbitrary")),
    )(x, w_bf16, b2)


# -----------------------------------------------------------------------------
# Kernel 2: repeat_interleave(mod, diff(cu_seqlens), dim=0) + chunk(..., 2, -1)
# -----------------------------------------------------------------------------
def repeat_interleave_chunk(mod, seg_ids, *, tq_target=256, tn_target=512):
    """mod: (B, 6*model_dim) f32, seg_ids: (N,) int32 -> two (N, 3*model_dim)."""
    B, six_m = mod.shape
    half = six_m // 2
    N = seg_ids.shape[0]

    tq = min(tq_target, _round_up(N, 8))
    n_pad = pl.cdiv(N, tq) * tq
    ids = jnp.pad(seg_ids.astype(jnp.int32), (0, n_pad - N)).reshape(n_pad, 1)

    # The two chunks of the (tiny, B-row) modulation table are sliced outside
    # the kernel so every last-dim block is legal (128-multiple or full dim).
    p1 = mod[:, :half]
    p2 = mod[:, half:]

    tn = _choose_tile(half, tn_target, 128)
    n_col = half // tn

    def kernel(ids_ref, p1_ref, p2_ref, o1_ref, o2_ref):
        tok_seg = ids_ref[...]                                      # (tq, 1) int32
        seg = jax.lax.broadcasted_iota(jnp.int32, (tq, B), 1)       # (tq, B)
        one_hot = (tok_seg == seg).astype(jnp.float32)
        # f32 one-hot matmul -> bit-exact row broadcast of the modulation table.
        o1_ref[...] = jnp.dot(one_hot, p1_ref[...],
                              preferred_element_type=jnp.float32).astype(o1_ref.dtype)
        o2_ref[...] = jnp.dot(one_hot, p2_ref[...],
                              preferred_element_type=jnp.float32).astype(o2_ref.dtype)

    out_spec = pl.BlockSpec((tq, tn), lambda i, j: (i, j))
    o1, o2 = pl.pallas_call(
        kernel,
        out_shape=(jax.ShapeDtypeStruct((n_pad, half), mod.dtype),
                   jax.ShapeDtypeStruct((n_pad, half), mod.dtype)),
        grid=(n_pad // tq, n_col),
        in_specs=[
            pl.BlockSpec((tq, 1), lambda i, j: (i, 0)),
            pl.BlockSpec((B, tn), lambda i, j: (0, j)),
            pl.BlockSpec((B, tn), lambda i, j: (0, j)),
        ],
        out_specs=(out_spec, out_spec),
        compiler_params=pltpu.CompilerParams(
            dimension_semantics=("parallel", "parallel")),
    )(ids, p1, p2)
    return o1[:N], o2[:N]


# -----------------------------------------------------------------------------
# Module forward
# -----------------------------------------------------------------------------
def modulation_forward(params, x, cu_seqlens, total_tokens):
    """JAX/Pallas equivalent of Modulation.forward.

    params: {"w": (time_dim, 6*model_dim), "b": (6*model_dim,)}
            (w is stored transposed vs. the PyTorch nn.Linear weight)
    x: (B, time_dim) -- one row per sequence
    cu_seqlens: (B+1,) int32 cumulative sequence lengths
    total_tokens: static Python int == int(cu_seqlens[-1])
    """
    # TODO(synk): torch derives the output length from cu_seqlens at runtime;
    # on TPU the total token count must be a static Python int.
    mod = silu_linear(x, params["w"], params["b"])            # (B, 6*model_dim)

    # token -> segment id  (== repeat_interleave with repeats = diff(cu_seqlens))
    tok = jnp.arange(total_tokens, dtype=jnp.int32)
    seg_ids = jnp.searchsorted(cu_seqlens[1:].astype(jnp.int32), tok,
                               side="right").astype(jnp.int32)

    self_attn_params, ff_params = repeat_interleave_chunk(mod, seg_ids)
    return self_attn_params, ff_params


# -----------------------------------------------------------------------------
# Deterministic example + reference check
# -----------------------------------------------------------------------------
if __name__ == "__main__":
    key = jax.random.PRNGKey(0)
    k0, k1, k2 = jax.random.split(key, 3)

    # small shapes consistent with the module
    B = 2               # number of sequences (rows of x)
    time_dim = 128
    model_dim = 128     # out_layer: time_dim -> 6*model_dim = 768
    cu_seqlens = jnp.array([0, 40, 96], jnp.int32)
    total_tokens = int(cu_seqlens[-1])

    x = jax.random.normal(k0, (B, time_dim), jnp.float32)
    # NOTE: the PyTorch module zero-inits out_layer; small random weights are
    # used here so the kernels are actually exercised and checkable.
    w = 0.02 * jax.random.normal(k1, (time_dim, 6 * model_dim), jnp.float32)
    b = 0.02 * jax.random.normal(k2, (6 * model_dim,), jnp.float32)
    params = {"w": w, "b": b}

    sa, ff = modulation_forward(params, x, cu_seqlens, total_tokens)
    jax.block_until_ready((sa, ff))

    # pure-JAX reference
    ref = jax.nn.silu(x) @ w + b
    ref = jnp.repeat(ref, jnp.diff(cu_seqlens), axis=0,
                     total_repeat_length=total_tokens)
    ref_sa, ref_ff = ref[:, :3 * model_dim], ref[:, 3 * model_dim:]

    assert sa.shape == (total_tokens, 3 * model_dim)
    assert ff.shape == (total_tokens, 3 * model_dim)
    assert jnp.allclose(sa, ref_sa, atol=2e-2, rtol=2e-2)
    assert jnp.allclose(ff, ref_ff, atol=2e-2, rtol=2e-2)
    print("KERNEL_OK")
</pallas_src>

<mosaic_0001>
module attributes {stable_mosaic.version = 11 : i64} {
  func.func @kernel(%arg0: i32, %arg1: i32, %arg2: memref<2x128xf32, #tpu.memory_space<vmem>>, %arg3: memref<128x384xbf16, #tpu.memory_space<vmem>>, %arg4: memref<1x384xf32, #tpu.memory_space<vmem>>, %arg5: memref<2x384xf32, #tpu.memory_space<vmem>>, %arg6: memref<2x384xf32, #tpu.memory_space<vmem>>) attributes {dimension_semantics = [#tpu.dimension_semantics<parallel>, #tpu.dimension_semantics<arbitrary>], iteration_bounds = array<i64: 2, 1>, scalar_prefetch = 0 : i64, scratch_operands = 1 : i64, tpu.core_type = #tpu.core_type<tc>, window_params = [{transform_indices = @transform_0, window_bounds = array<i64: 2, 128>}, {transform_indices = @transform_1, window_bounds = array<i64: 128, 384>}, {transform_indices = @transform_2, window_bounds = array<i64: 1, 384>}, {transform_indices = @transform_3, window_bounds = array<i64: 2, 384>}]} {
    %c0_i32 = arith.constant 0 : i32
    %0 = arith.cmpi eq, %arg1, %c0_i32 : i32
    %1 = arith.extui %0 : i1 to i32
    %c0_i32_0 = arith.constant 0 : i32
    %2 = arith.cmpi ne, %1, %c0_i32_0 : i32
    scf.if %2 {
      %cst_11 = arith.constant 0.000000e+00 : f32
      %19 = vector.broadcast %cst_11 : f32 to vector<2x384xf32>
      %c0_12 = arith.constant 0 : index
      %c0_13 = arith.constant 0 : index
      %20 = vector.load %arg6[%c0_12, %c0_13] : memref<2x384xf32, #tpu.memory_space<vmem>>, vector<2x384xf32>
      tpu.vector_store %arg6[%c0_12, %c0_13], %19 {strides = array<i32>} : memref<2x384xf32, #tpu.memory_space<vmem>>, vector<2x384xf32>,
    } else {
    }
    %c0 = arith.constant 0 : index
    %c0_1 = arith.constant 0 : index
    %3 = vector.load %arg2[%c0, %c0_1] : memref<2x128xf32, #tpu.memory_space<vmem>>, vector<2x128xf32>
    %4 = arith.negf %3 : vector<2x128xf32>
    %5 = math.exp %4 : vector<2x128xf32>
    %cst = arith.constant 1.000000e+00 : f32
    %6 = vector.broadcast %cst : f32 to vector<2x128xf32>
    %7 = arith.addf %6, %5 : vector<2x128xf32>
    %8 = arith.divf %6, %7 : vector<2x128xf32>
    %9 = arith.mulf %3, %8 : vector<2x128xf32>
    %10 = arith.truncf %9 : vector<2x128xf32> to vector<2x128xbf16>
    %c0_2 = arith.constant 0 : index
    %c0_3 = arith.constant 0 : index
    %11 = vector.load %arg6[%c0_2, %c0_3] : memref<2x384xf32, #tpu.memory_space<vmem>>, vector<2x384xf32>
    %c0_4 = arith.constant 0 : index
    %c0_5 = arith.constant 0 : index
    %12 = vector.load %arg3[%c0_4, %c0_5] : memref<128x384xbf16, #tpu.memory_space<vmem>>, vector<128x384xbf16>
    %cst_6 = arith.constant dense<0.000000e+00> : vector<2x384xf32>
    %13 = tpu.matmul %10, %12, %cst_6 {dimension_numbers = #tpu.dot_dimension_numbers<[1], [0], [0], [1], [0, 0, 1, 1], [], []>} : vector<2x128xbf16>, vector<128x384xbf16>, vector<2x384xf32> -> vector<2x384xf32>
    %14 = arith.addf %11, %13 : vector<2x384xf32>
    %c0_7 = arith.constant 0 : index
    %c0_8 = arith.constant 0 : index
    %15 = vector.load %arg6[%c0_7, %c0_8] : memref<2x384xf32, #tpu.memory_space<vmem>>, vector<2x384xf32>
    tpu.vector_store %arg6[%c0_7, %c0_8], %14 {strides = array<i32>} : memref<2x384xf32, #tpu.memory_space<vmem>>, vector<2x384xf32>,
    %c0_i32_9 = arith.constant 0 : i32
    %16 = arith.cmpi eq, %arg1, %c0_i32_9 : i32
    %17 = arith.extui %16 : i1 to i32
    %c0_i32_10 = arith.constant 0 : i32
    %18 = arith.cmpi ne, %17, %c0_i32_10 : i32
    scf.if %18 {
      %c0_11 = arith.constant 0 : index
      %c0_12 = arith.constant 0 : index
      %19 = vector.load %arg6[%c0_11, %c0_12] : memref<2x384xf32, #tpu.memory_space<vmem>>, vector<2x384xf32>
      %c0_13 = arith.constant 0 : index
      %c0_14 = arith.constant 0 : index
      %20 = vector.load %arg4[%c0_13, %c0_14] : memref<1x384xf32, #tpu.memory_space<vmem>>, vector<1x384xf32>
      %21 = vector.broadcast %20 : vector<1x384xf32> to vector<2x384xf32>
      %22 = arith.addf %19, %21 : vector<2x384xf32>
      %c0_15 = arith.constant 0 : index
      %c0_16 = arith.constant 0 : index
      %23 = vector.load %arg5[%c0_15, %c0_16] : memref<2x384xf32, #tpu.memory_space<vmem>>, vector<2x384xf32>
      tpu.vector_store %arg5[%c0_15, %c0_16], %22 {strides = array<i32>} : memref<2x384xf32, #tpu.memory_space<vmem>>, vector<2x384xf32>,
    } else {
    }
    return
  }
  func.func @transform_0(%arg0: i32, %arg1: i32) -> (i32, i32) {
    %c0_i32 = arith.constant 0 : i32
    %c0_i32_0 = arith.constant 0 : i32
    return %c0_i32, %arg1 : i32, i32
  }
  func.func @transform_1(%arg0: i32, %arg1: i32) -> (i32, i32) {
    %c0_i32 = arith.constant 0 : i32
    return %arg1, %arg0 : i32, i32
  }
  func.func @transform_2(%arg0: i32, %arg1: i32) -> (i32, i32) {
    %c0_i32 = arith.constant 0 : i32
    %c0_i32_0 = arith.constant 0 : i32
    return %c0_i32, %arg0 : i32, i32
  }
  func.func @transform_3(%arg0: i32, %arg1: i32) -> (i32, i32) {
    %c0_i32 = arith.constant 0 : i32
    %c0_i32_0 = arith.constant 0 : i32
    return %c0_i32, %arg0 : i32, i32
  }
}

</mosaic_0001>

<llo_original>
// kernel: tpu_custom_call.1
$region0: #{tpu_custom_call.1}
  #allocation0 [shape = 'u32[]', space=smem, size = 0x4, offset = 0x4, fixed_abs, tag = 'smem constant byte address 0x4 - core index']
  #allocation1 [shape = 'u32[144,128]{1,0:T(1,128)}', space=vmem, size = 0x12000, scoped, tag = 'internal scratch']
  #allocation2 [shape = 'f32[2,384]{1,0:T(2,128)}', space=vmem, size = 0xc00, scoped, tag = 'scratch operand']
  %s0 = inlined_call_operand.hbm [shape: f32[2,128], index: 0, kind: input, shape index: {}]
  %s1 = inlined_call_operand.hbm [shape: bf16[128,768], index: 1, kind: input, shape index: {}]
  %s2 = inlined_call_operand.hbm [shape: f32[1,768], index: 2, kind: input, shape index: {}]
  %s3 = inlined_call_operand.hbm [shape: f32[2,768], index: 3, kind: output, shape index: {}]
  %s4 = sld [smem:[#allocation0]]
  $region65: #{tpu_custom_call.1} parent=0
    _
  %s6 = ssub.s32 1, %s4
  %s7 = scalar_select 0, %s6, %s4
  $region1: #{tpu_custom_call.1} parent=0
    #allocation3 [shape = 'u8[1024]{0}', space=vmem, size = 0x400, scoped, tag = 'input window, operand 0, single buffered']
    #allocation4 [shape = 's32[2]{0}', space=sflag, size = 0x8, scoped, tag = 'scoped memory for tpu_custom_call.1']
    #allocation5 [shape = 's32[2]{0}', space=sflag, size = 0x8, scoped, tag = 'scoped memory for tpu_custom_call.1']
    #allocation6 [shape = 'u8[196608]{0}', space=vmem, size = 0x30000, scoped, tag = 'input window, operand 1']
    #allocation7 [shape = 's32[2]{0}', space=sflag, size = 0x8, scoped, tag = 'scoped memory for tpu_custom_call.1']
    #allocation8 [shape = 'u8[3072]{0}', space=vmem, size = 0xc00, scoped, tag = 'input window, operand 2']
    #allocation9 [shape = 'u8[6144]{0}', space=vmem, size = 0x1800, scoped, tag = 'output window, operand 0']
    %8 = vsyncpa [#allocation4], 0
    %9 = vsyncpa [#allocation7], 0
    %s10 = scalar_lea.sflag [#allocation7], 1
    %11 = vsyncpa %s10, 0
    %12 = vsyncpa [#allocation5], 0
    %s13 = scalar_lea.sflag [#allocation5], 1
    %14 = vsyncpa %s13, 0
    loop: start=0, step=1, limit=4
    $region2: #{tpu_custom_call.1} parent=1 // loop_pre_header
      _
    $region3: #{tpu_custom_call.1} parent=1 // loop_header
      %s16 = sphi 0, %s20
      %p17 = scmp.ge.s32.totalorder %s16, 4
      %s23 = sphi 0, %s35
      %s24 = sphi 0, %s31
      %s25 = sphi 0, %s23
      %s26 = sphi 0, %s24
      %s27 = sphi 0, %s25
      %s28 = sphi 0, %s26
      %s38 = sphi 0, %s40
      %s41 = sphi 0, %s38
      %s42 = sphi 0, %s41
      %s58 = sphi 0, %s42
      %s66 = sphi 0, %s68
      %s69 = sphi 0, %s66
      %s70 = sphi 0, %s69
      %s86 = sphi 0, %s70
      %s92 = sphi 0, %s94
      %s95 = sphi 0, %s92
      %s96 = sphi 0, %s95
      %s112 = sphi 0, %s96
      %s118 = sphi 0, %s120
      %s121 = sphi 0, %s118
      %s122 = sphi 0, %s121
      %s138 = sphi 0, %s122
    $region4: #{tpu_custom_call.1} parent=1 // loop_header_branch
      %19 = sbr.rel (%p17) target = $region8
    $region5: #{tpu_custom_call.1} parent=1 // loop_body
      %s21 = ssub.s32 %s16, 1
      %s22 = ssub.s32 %s16, 2
      %s29 = sadd.s32 1, %s24
      %p30 = scmp.ge.s32.totalorder %s29, 1
      %s31 = scalar_select %p30, 0, %s29
      %s32 = sadd.s32 1, %s23
      %s33 = scalar_select %p30, %s32, %s23
      %p34 = scmp.ge.s32.totalorder %s33, 2
      %s35 = scalar_select %p34, 0, %s33
      %s36 = ssub.s32 %s24, %s31
      %p37 = scmp.eq.s32.totalorder %s36, 0
      %s39 = sadd.s32 %s38, 1
      %s40 = scalar_select %p37, %s38, %s39
      %p43 = pneg %p37
      %p44 = scmp.eq.s32.totalorder %s16, 1
      %p45 = por %p43, %p44
      %p46 = scmp.ne.s32.totalorder %s38, %s41
      %p47 = scmp.eq.s32.totalorder %s16, 0
      %p48 = por %p46, %p47
      %p49 = scmp.ne.s32.totalorder %s38, %s41
      %p50 = scmp.eq.s32.totalorder %s21, 1
      %p51 = por %p49, %p50
      %p52 = scmp.ne.s32.totalorder %s41, %s42
      %p53 = scmp.eq.s32.totalorder %s21, 0
      %p54 = por %p52, %p53
      %p55 = scmp.ne.s32.totalorder %s41, %s42
      %p56 = scmp.eq.s32.totalorder %s22, 1
      %p57 = por %p55, %p56
      %p59 = scmp.ne.s32.totalorder %s42, %s58
      %p60 = scmp.eq.s32.totalorder %s22, 0
      %p61 = por %p59, %p60
      %s62 = ssub.s32 %s24, %s31
      %s63 = ssub.s32 %s23, %s35
      %s64 = sor.u32 %s62, %s63
      %p65 = scmp.eq.s32.totalorder %s64, 0
      %s67 = sadd.s32 %s66, 1
      %s68 = scalar_select %p65, %s66, %s67
      %p71 = pneg %p65
      %p72 = scmp.eq.s32.totalorder %s16, 1
      %p73 = por %p71, %p72
      %p74 = scmp.ne.s32.totalorder %s66, %s69
      %p75 = scmp.eq.s32.totalorder %s16, 0
      %p76 = por %p74, %p75
      %p77 = scmp.ne.s32.totalorder %s66, %s69
      %p78 = scmp.eq.s32.totalorder %s21, 1
      %p79 = por %p77, %p78
      %p80 = scmp.ne.s32.totalorder %s69, %s70
      %p81 = scmp.eq.s32.totalorder %s21, 0
      %p82 = por %p80, %p81
      %p83 = scmp.ne.s32.totalorder %s69, %s70
      %p84 = scmp.eq.s32.totalorder %s22, 1
      %p85 = por %p83, %p84
      %p87 = scmp.ne.s32.totalorder %s70, %s86
      %p88 = scmp.eq.s32.totalorder %s22, 0
      %p89 = por %p87, %p88
      %s90 = ssub.s32 %s23, %s35
      %p91 = scmp.eq.s32.totalorder %s90, 0
      %s93 = sadd.s32 %s92, 1
      %s94 = scalar_select %p91, %s92, %s93
      %p97 = pneg %p91
      %p98 = scmp.eq.s32.totalorder %s16, 1
      %p99 = por %p97, %p98
      %p100 = scmp.ne.s32.totalorder %s92, %s95
      %p101 = scmp.eq.s32.totalorder %s16, 0
      %p102 = por %p100, %p101
      %p103 = scmp.ne.s32.totalorder %s92, %s95
      %p104 = scmp.eq.s32.totalorder %s21, 1
      %p105 = por %p103, %p104
      %p106 = scmp.ne.s32.totalorder %s95, %s96
      %p107 = scmp.eq.s32.totalorder %s21, 0
      %p108 = por %p106, %p107
      %p109 = scmp.ne.s32.totalorder %s95, %s96
      %p110 = scmp.eq.s32.totalorder %s22, 1
      %p111 = por %p109, %p110
      %p113 = scmp.ne.s32.totalorder %s96, %s112
      %p114 = scmp.eq.s32.totalorder %s22, 0
      %p115 = por %p113, %p114
      %s116 = ssub.s32 %s23, %s35
      %p117 = scmp.eq.s32.totalorder %s116, 0
      %s119 = sadd.s32 %s118, 1
      %s120 = scalar_select %p117, %s118, %s119
      %p123 = pneg %p117
      %p124 = scmp.eq.s32.totalorder %s16, 1
      %p125 = por %p123, %p124
      %p126 = scmp.ne.s32.totalorder %s118, %s121
      %p127 = scmp.eq.s32.totalorder %s16, 0
      %p128 = por %p126, %p127
      %p129 = scmp.ne.s32.totalorder %s118, %s121
      %p130 = scmp.eq.s32.totalorder %s21, 1
      %p131 = por %p129, %p130
      %p132 = scmp.ne.s32.totalorder %s121, %s122
      %p133 = scmp.eq.s32.totalorder %s21, 0
      %p134 = por %p132, %p133
      %p135 = scmp.ne.s32.totalorder %s121, %s122
      %p136 = scmp.eq.s32.totalorder %s22, 1
      %p137 = por %p135, %p136
      %p139 = scmp.ne.s32.totalorder %s122, %s138
      %p140 = scmp.eq.s32.totalorder %s22, 0
      %p141 = por %p139, %p140
      %p142 = scmp.le.s32.totalorder 1, %s16
      %p143 = scmp.lt.s32.totalorder %s16, 3
      %p144 = pnand %p142, %p143
      %p145 = pneg %p144
      // Predicated region
      $region9: #{tpu_custom_call.1} parent=5 // pred_check
        _
      $region10: #{tpu_custom_call.1} parent=5 // pred_check_branch
        %147 = sbr.rel (%p144) target = $region12
      $region11: #{tpu_custom_call.1} parent=5 // pred_region
        %s148 = ssub.s32 %s16, 1
        // Predicated region
        $region13: #{tpu_custom_call.1} parent=11 // pred_check
          %p149 = pneg %p54
        $region14: #{tpu_custom_call.1} parent=11 // pred_check_branch
          %151 = sbr.rel (%p149) target = $region16
        $region15: #{tpu_custom_call.1} parent=11 // pred_region
          %s153 = ssub.s32 32, 32
          %154 = vsyncadd [#allocation4], %s153
          %s155 = smul.addr %s26, 32
          %s156 = scalar_lea.hbm %s0, %s155
          %s158 = sshll.u32 [#allocation3], 4
          %s159 = int_to_ptr.vmem [resolvable:$true] %s158
          %161 = dma.hbm_to_vmem [thread:$0]  %s156, 32, %s159, [#allocation4]
        $region16: #{tpu_custom_call.1} parent=11 // pred_fallthru
          _
      $region12: #{tpu_custom_call.1} parent=5 // pred_fallthru
        _
      %p162 = scmp.lt.s32.totalorder %s16, 2
      // Predicated region
      $region17: #{tpu_custom_call.1} parent=5 // pred_check
        %p163 = pneg %p162
      $region18: #{tpu_custom_call.1} parent=5 // pred_check_branch
        %165 = sbr.rel (%p163) target = $region20
      $region19: #{tpu_custom_call.1} parent=5 // pred_region
        // Predicated region
        $region21: #{tpu_custom_call.1} parent=19 // pred_check
          %p166 = pneg %p76
        $region22: #{tpu_custom_call.1} parent=19 // pred_check_branch
          %168 = sbr.rel (%p166) target = $region24
        $region23: #{tpu_custom_call.1} parent=19 // pred_region
          %s169 = sand.u32 %s16, 1
          %s170 = scalar_lea.sflag [#allocation7], %s169
          %s171 = sand.u32 %s66, 1
          %s172 = smul.addr %s171, 192
          %s173 = scalar_lea.vmem [#allocation6], %s172
          %s174 = smul.u32 16, %s24
          %s175 = smul.u32 3, %s23
          %s177 = ssub.s32 3072, 3072
          %178 = vsyncadd %s170, %s177
          %s179 = smul.addr %s174, 6
          %s180 = sadd.s32 %s175, %s179
          %s181 = smul.addr %s180, 64
          %s182 = scalar_lea.hbm %s1, %s181
          %s183 = sshll.u32 %s173, 4
          %s184 = int_to_ptr.vmem [resolvable:$true] %s183
          %189 = dma.hbm_to_vmem [thread:$0]  %s182, 3072, %s184, %s170, 384, 192, 12
        $region24: #{tpu_custom_call.1} parent=19 // pred_fallthru
          _
        // Predicated region
        $region25: #{tpu_custom_call.1} parent=19 // pred_check
          %p190 = pneg %p102
        $region26: #{tpu_custom_call.1} parent=19 // pred_check_branch
          %192 = sbr.rel (%p190) target = $region28
        $region27: #{tpu_custom_call.1} parent=19 // pred_region
          %s193 = sand.u32 %s16, 1
          %s194 = scalar_lea.sflag [#allocation7], %s193
          %s195 = sand.u32 %s92, 1
          %s196 = smul.addr %s195, 3
          %s197 = scalar_lea.vmem [#allocation8], %s196
          %s198 = smul.u32 3, %s23
          %s200 = ssub.s32 48, 48
          %201 = vsyncadd %s194, %s200
          %s202 = smul.addr %s198, 16
          %s203 = scalar_lea.hbm %s2, %s202
          %s205 = sshll.u32 %s197, 4
          %s206 = int_to_ptr.vmem [resolvable:$true] %s205
          %208 = dma.hbm_to_vmem [thread:$0]  %s203, 48, %s206, %s194
        $region28: #{tpu_custom_call.1} parent=19 // pred_fallthru
          _
      $region20: #{tpu_custom_call.1} parent=5 // pred_fallthru
        _
      %p209 = scmp.le.s32.totalorder 1, %s16
      %p210 = scmp.lt.s32.totalorder %s16, 3
      %p211 = pnand %p209, %p210
      %p212 = pneg %p211
      // Predicated region
      $region29: #{tpu_custom_call.1} parent=5 // pred_check
        _
      $region30: #{tpu_custom_call.1} parent=5 // pred_check_branch
        %214 = sbr.rel (%p211) target = $region32
      $region31: #{tpu_custom_call.1} parent=5 // pred_region
        %s215 = ssub.s32 %s16, 1
        // Predicated region
        $region33: #{tpu_custom_call.1} parent=31 // pred_check
          %p216 = pneg %p54
        $region34: #{tpu_custom_call.1} parent=31 // pred_check_branch
          %218 = sbr.rel (%p216) target = $region36
        $region35: #{tpu_custom_call.1} parent=31 // pred_region
          %219 = dma.done [#allocation4], 32
        $region36: #{tpu_custom_call.1} parent=31 // pred_fallthru
          _
        %s220 = sand.u32 %s21, 1
        %s221 = scalar_lea.sflag [#allocation7], %s220
        %s222 = sand.u32 %s69, 1
        %s223 = smul.addr %s222, 192
        %s224 = scalar_lea.vmem [#allocation6], %s223
        // Predicated region
        $region37: #{tpu_custom_call.1} parent=31 // pred_check
          %p225 = pneg %p82
        $region38: #{tpu_custom_call.1} parent=31 // pred_check_branch
          %227 = sbr.rel (%p225) target = $region40
        $region39: #{tpu_custom_call.1} parent=31 // pred_region
          %228 = dma.done %s221, 3072
        $region40: #{tpu_custom_call.1} parent=31 // pred_fallthru
          _
        %s229 = sand.u32 %s21, 1
        %s230 = scalar_lea.sflag [#allocation7], %s229
        %s231 = sand.u32 %s95, 1
        %s232 = smul.addr %s231, 3
        %s233 = scalar_lea.vmem [#allocation8], %s232
        // Predicated region
        $region41: #{tpu_custom_call.1} parent=31 // pred_check
          %p234 = pneg %p108
        $region42: #{tpu_custom_call.1} parent=31 // pred_check_branch
          %236 = sbr.rel (%p234) target = $region44
        $region43: #{tpu_custom_call.1} parent=31 // pred_region
          %237 = dma.done %s230, 48
        $region44: #{tpu_custom_call.1} parent=31 // pred_fallthru
          _
        %p238 = pneg %p54
        %p239 = pneg %p51
        %s240 = sand.u32 %s21, 1
        %s241 = scalar_lea.sflag [#allocation7], %s240
        %s242 = sand.u32 %s69, 1
        %s243 = smul.addr %s242, 192
        %s244 = scalar_lea.vmem [#allocation6], %s243
        %p245 = pneg %p82
        %p246 = pneg %p79
        %s247 = sand.u32 %s21, 1
        %s248 = scalar_lea.sflag [#allocation7], %s247
        %s249 = sand.u32 %s95, 1
        %s250 = smul.addr %s249, 3
        %s251 = scalar_lea.vmem [#allocation8], %s250
        %p252 = pneg %p108
        %p253 = pneg %p105
        %p254 = pneg %p134
        %p255 = pneg %p131
        %s256 = sand.u32 %s121, 1
        %s257 = scalar_lea.sflag [#allocation5], %s256
        %s258 = sand.u32 %s121, 1
        %s259 = smul.addr %s258, 6
        %s260 = scalar_lea.vmem [#allocation9], %s259
        %s261 = smul.u32 16, %s26
        %s262 = smul.u32 3, %s25
        %s263 = smul.u32 3, %s25
        %s264 = smul.u32 3, %s25
        %p266 = scmp.eq.s32.totalorder %s26, 0
        // Predicated region
        $region45: #{tpu_custom_call.1} parent=31 // pred_check
          %p267 = pneg %p266
        $region46: #{tpu_custom_call.1} parent=31 // pred_check_branch
          %269 = sbr.rel (%p267) target = $region48
        $region47: #{tpu_custom_call.1} parent=31 // pred_region
          %270 = vst [vmem:[#allocation2] sm:$0x3f] 0.0
        $region48: #{tpu_custom_call.1} parent=31 // pred_fallthru
          _
        %v271 = vld [vmem:[#allocation3] sm:$0x3]
        %v272 = vxor.u32 %v271, 2147483648
        %v273 = vmul.f32 %v272, 1.442695
        %v274 = vpow.pop %v273
        %v275 = vadd.f32 %v274, 1.0
        %v276 = vrcp.pop %v275
        %v277 = vmul.f32 1.0, %v276
        %v278 = vmul.f32 %v271, %v277
        %v279 = vpack.c.bf16 %v278, %v278
        %v280 = vld [vmem:[#allocation2] sm:$0x3f]
        %v281 = vld [vmem:[%s224] sm:$0xff]
        %v282 = vld [vmem:[%s224 + $0x8] sm:$0xf]
        %v283 = vld [vmem:[%s224 + $0xc] sm:$0xff]
        %v284 = vld [vmem:[%s224 + $0x14] sm:$0xf]
        %v285 = vld [vmem:[%s224 + $0x18] sm:$0xff]
        %v286 = vld [vmem:[%s224 + $0x20] sm:$0xf]
        %v287 = vld [vmem:[%s224 + $0x24] sm:$0xff]
        %v288 = vld [vmem:[%s224 + $0x2c] sm:$0xf]
        %v289 = vld [vmem:[%s224 + $0x30] sm:$0xff]
        %v290 = vld [vmem:[%s224 + $0x38] sm:$0xf]
        %v291 = vld [vmem:[%s224 + $0x3c] sm:$0xff]
        %v292 = vld [vmem:[%s224 + $0x44] sm:$0xf]
        %v293 = vld [vmem:[%s224 + $0x48] sm:$0xff]
        %v294 = vld [vmem:[%s224 + $0x50] sm:$0xf]
        %v295 = vld [vmem:[%s224 + $0x54] sm:$0xff]
        %v296 = vld [vmem:[%s224 + $0x5c] sm:$0xf]
        %v297 = vld [vmem:[%s224 + $0x60] sm:$0xff]
        %v298 = vld [vmem:[%s224 + $0x68] sm:$0xf]
        %v299 = vld [vmem:[%s224 + $0x6c] sm:$0xff]
        %v300 = vld [vmem:[%s224 + $0x74] sm:$0xf]
        %v301 = vld [vmem:[%s224 + $0x78] sm:$0xff]
        %v302 = vld [vmem:[%s224 + $0x80] sm:$0xf]
        %v303 = vld [vmem:[%s224 + $0x84] sm:$0xff]
        %v304 = vld [vmem:[%s224 + $0x8c] sm:$0xf]
        %v305 = vld [vmem:[%s224 + $0x90] sm:$0xff]
        %v306 = vld [vmem:[%s224 + $0x98] sm:$0xf]
        %v307 = vld [vmem:[%s224 + $0x9c] sm:$0xff]
        %v308 = vld [vmem:[%s224 + $0xa4] sm:$0xf]
        %v309 = vld [vmem:[%s224 + $0xa8] sm:$0xff]
        %v310 = vld [vmem:[%s224 + $0xb0] sm:$0xf]
        %v311 = vld [vmem:[%s224 + $0xb4] sm:$0xff]
        %v312 = vld [vmem:[%s224 + $0xbc] sm:$0xf]
        %v345 = vunpack.c.l.b16 %v281
        %v346 = vunpack.c.h.b16 %v281
        %v347 = vunpack.c.l.b16 %v282
        %v348 = vunpack.c.l.b16 %v283
        %v349 = vunpack.c.h.b16 %v283
        %v350 = vunpack.c.l.b16 %v284
        %v351 = vunpack.c.l.b16 %v285
        %v352 = vunpack.c.h.b16 %v285
        %v353 = vunpack.c.l.b16 %v286
        %v354 = vunpack.c.l.b16 %v287
        %v355 = vunpack.c.h.b16 %v287
        %v356 = vunpack.c.l.b16 %v288
        %v357 = vunpack.c.l.b16 %v289
        %v358 = vunpack.c.h.b16 %v289
        %v359 = vunpack.c.l.b16 %v290
        %v360 = vunpack.c.l.b16 %v291
        %v361 = vunpack.c.h.b16 %v291
        %v362 = vunpack.c.l.b16 %v292
        %v363 = vunpack.c.l.b16 %v293
        %v364 = vunpack.c.h.b16 %v293
        %v365 = vunpack.c.l.b16 %v294
        %v366 = vunpack.c.l.b16 %v295
        %v367 = vunpack.c.h.b16 %v295
        %v368 = vunpack.c.l.b16 %v296
        %v369 = vunpack.c.l.b16 %v297
        %v370 = vunpack.c.h.b16 %v297
        %v371 = vunpack.c.l.b16 %v298
        %v372 = vunpack.c.l.b16 %v299
        %v373 = vunpack.c.h.b16 %v299
        %v374 = vunpack.c.l.b16 %v300
        %v375 = vunpack.c.l.b16 %v301
        %v376 = vunpack.c.h.b16 %v301
        %v377 = vunpack.c.l.b16 %v302
        %v378 = vunpack.c.l.b16 %v303
        %v379 = vunpack.c.h.b16 %v303
        %v380 = vunpack.c.l.b16 %v304
        %v381 = vunpack.c.l.b16 %v305
        %v382 = vunpack.c.h.b16 %v305
        %v383 = vunpack.c.l.b16 %v306
        %v384 = vunpack.c.l.b16 %v307
        %v385 = vunpack.c.h.b16 %v307
        %v386 = vunpack.c.l.b16 %v308
        %v387 = vunpack.c.l.b16 %v309
        %v388 = vunpack.c.h.b16 %v309
        %v389 = vunpack.c.l.b16 %v310
        %v390 = vunpack.c.l.b16 %v311
        %v391 = vunpack.c.h.b16 %v311
        %v392 = vunpack.c.l.b16 %v312
        %v393 = vpack.c.b16 %v348, %v345
        %v394 = vpack.c.b16 %v349, %v346
        %v395 = vpack.c.b16 %v350, %v347
        %v396 = vpack.c.b16 %v354, %v351
        %v397 = vpack.c.b16 %v355, %v352
        %v398 = vpack.c.b16 %v356, %v353
        %v399 = vpack.c.b16 %v360, %v357
        %v400 = vpack.c.b16 %v361, %v358
        %v401 = vpack.c.b16 %v362, %v359
        %v402 = vpack.c.b16 %v366, %v363
        %v403 = vpack.c.b16 %v367, %v364
        %v404 = vpack.c.b16 %v368, %v365
        %v405 = vpack.c.b16 %v372, %v369
        %v406 = vpack.c.b16 %v373, %v370
        %v407 = vpack.c.b16 %v374, %v371
        %v408 = vpack.c.b16 %v378, %v375
        %v409 = vpack.c.b16 %v379, %v376
        %v410 = vpack.c.b16 %v380, %v377
        %v411 = vpack.c.b16 %v384, %v381
        %v412 = vpack.c.b16 %v385, %v382
        %v413 = vpack.c.b16 %v386, %v383
        %v414 = vpack.c.b16 %v390, %v387
        %v415 = vpack.c.b16 %v391, %v388
        %v416 = vpack.c.b16 %v392, %v389
        %441 = vmatprep.subr.bf16.mxu0 %v415
        %442 = vmatpush1.bf16.msra.mxu0 %v414
        %443 = vmatprep.subr.bf16.mxu0 %v412
        %444 = vmatpush1.bf16.msra.mxu0 %v411
        %445 = vmatprep.subr.bf16.mxu0 %v409
        %446 = vmatpush1.bf16.msra.mxu0 %v408
        %447 = vmatprep.subr.bf16.mxu0 %v406
        %448 = vmatpush1.bf16.msra.mxu0 %v405
        %449 = vmatprep.subr.bf16.mxu0 %v403
        %450 = vmatpush1.bf16.msra.mxu0 %v402
        %451 = vmatprep.subr.bf16.mxu0 %v400
        %452 = vmatpush1.bf16.msra.mxu0 %v399
        %453 = vmatprep.subr.bf16.mxu0 %v397
        %454 = vmatpush1.bf16.msra.mxu0 %v396
        %455 = vmatprep.subr.bf16.mxu0 %v394
        %456 = vmatpush1.bf16.msra.mxu0 %v393
        %457 = vmatprep.subr.bf16.mxu0 0
        %458 = vmatpush2.bf16.msra.mxu0 0
        %459 = vmatprep.subr.bf16.mxu0 0
        %460 = vmatpush2.bf16.msra.mxu0 0
        %461 = vmatprep.subr.bf16.mxu0 0
        %462 = vmatpush2.bf16.msra.mxu0 0
        %463 = vmatprep.subr.bf16.mxu0 0
        %464 = vmatpush2.bf16.msra.mxu0 0
        %465 = vmatprep.subr.bf16.mxu0 0
        %466 = vmatpush2.bf16.msra.mxu0 0
        %467 = vmatprep.subr.bf16.mxu0 0
        %468 = vmatpush2.bf16.msra.mxu0 0
        %469 = vmatprep.subr.bf16.mxu0 0
        %470 = vmatpush2.bf16.msra.mxu0 0
        %471 = vmatprep.subr.bf16.mxu0 0
        %472 = vmatpush2.bf16.msra.mxu0 0
        %473 = vmatprep.mubr.bf16.mxu0 0
        %474 = vmatmul.mubr.bf16.gmra.mxu0 %v279
        %v475 = vpop.f32.mrf.mxu0
        %v476 = vadd.f32 0.0, %v475
        %v477 = vpop.f32.mrf.mxu0
        %v478 = vadd.f32 0.0, %v477
        %v479 = vpop.f32.mrf.mxu0
        %v480 = vpop.f32.mrf.mxu0
        %481 = vdwg.mxu0
        %482 = vmatprep.subr.bf16.mxu0 0
        %483 = vmatpush1.bf16.msra.mxu0 %v416
        %484 = vmatprep.subr.bf16.mxu0 0
        %485 = vmatpush1.bf16.msra.mxu0 %v413
        %486 = vmatprep.subr.bf16.mxu0 0
        %487 = vmatpush1.bf16.msra.mxu0 %v410
        %488 = vmatprep.subr.bf16.mxu0 0
        %489 = vmatpush1.bf16.msra.mxu0 %v407
        %490 = vmatprep.subr.bf16.mxu0 0
        %491 = vmatpush1.bf16.msra.mxu0 %v404
        %492 = vmatprep.subr.bf16.mxu0 0
        %493 = vmatpush1.bf16.msra.mxu0 %v401
        %494 = vmatprep.subr.bf16.mxu0 0
        %495 = vmatpush1.bf16.msra.mxu0 %v398
        %496 = vmatprep.subr.bf16.mxu0 0
        %497 = vmatpush1.bf16.msra.mxu0 %v395
        %498 = vmatprep.subr.bf16.mxu0 0
        %499 = vmatpush2.bf16.msra.mxu0 0
        %500 = vmatprep.subr.bf16.mxu0 0
        %501 = vmatpush2.bf16.msra.mxu0 0
        %502 = vmatprep.subr.bf16.mxu0 0
        %503 = vmatpush2.bf16.msra.mxu0 0
        %504 = vmatprep.subr.bf16.mxu0 0
        %505 = vmatpush2.bf16.msra.mxu0 0
        %506 = vmatprep.subr.bf16.mxu0 0
        %507 = vmatpush2.bf16.msra.mxu0 0
        %508 = vmatprep.subr.bf16.mxu0 0
        %509 = vmatpush2.bf16.msra.mxu0 0
        %510 = vmatprep.subr.bf16.mxu0 0
        %511 = vmatpush2.bf16.msra.mxu0 0
        %512 = vmatprep.subr.bf16.mxu0 0
        %513 = vmatpush2.bf16.msra.mxu0 0
        %514 = vmatprep.mubr.bf16.mxu0 0
        %515 = vmatmul.mubr.bf16.gmra.mxu0 %v279
        %v516 = vpop.f32.mrf.mxu0
        %v517 = vadd.f32 0.0, %v516
        %v518 = vpop.f32.mrf.mxu0
        %v519 = vpop.f32.mrf.mxu0
        %v520 = vpop.f32.mrf.mxu0
        %521 = vdwg.mxu0
        %v525 = vcombine.low %v476, %v478
        %v527 = vunpack.c.l.s4 1983009808
        %v528 = vunpack.c.0.s8 %v527
        %v529 = vlaneseq
        %v530 = vshrl.u32 %v529, 7
        %v531 = vsub.s32 %v528, %v530
        %v532 = vrot.slane %v525, %v531
        %v534 = vunpack.c.l.s4 1983009808
        %v535 = vunpack.c.0.s8 %v534
        %v536 = vlaneseq
        %v537 = vshrl.u32 %v536, 7
        %v538 = vsub.s32 %v535, %v537
        %v539 = vrot.slane %v517, %v538
        %v540 = vcombine.low %v532, %v539
        %v542 = vadd.f32 %v280, %v540
        %543 = vst [vmem:[#allocation2] sm:$0x3f] %v542
        // Predicated region
        $region49: #{tpu_custom_call.1} parent=31 // pred_check
          %p544 = pneg %p266
        $region50: #{tpu_custom_call.1} parent=31 // pred_check_branch
          %546 = sbr.rel (%p544) target = $region52
        $region51: #{tpu_custom_call.1} parent=31 // pred_region
          %v547 = vld [vmem:[#allocation2] sm:$0x3f]
          %v548 = vld [vmem:[%s233] sm:$0x7]
          %v550 = vlaneseq
          %v551 = vshrl.u32 %v550, 7
          %v552 = vsub.s32 0, %v551
          %v553 = vrot.slane %v548, %v552
          %v554 = vlaneseq
          %v555 = vshrl.u32 %v554, 7
          %v556 = vsub.s32 1, %v555
          %v557 = vrot.slane %v548, %v556
          %v558 = vlaneseq
          %v559 = vshrl.u32 %v558, 7
          %v560 = vsub.s32 2, %v559
          %v561 = vrot.slane %v548, %v560
          %v562 = vcombine.low %v553, %v557
          %v564 = vunpack.c.l.s4 1983009808
          %v565 = vunpack.c.0.s8 %v564
          %v566 = vlaneseq
          %v567 = vshrl.u32 %v566, 7
          %v568 = vsub.s32 %v565, %v567
          %v569 = vrot.slane %v562, %v568
          %v571 = vunpack.c.l.s4 1983009808
          %v572 = vunpack.c.0.s8 %v571
          %v573 = vlaneseq
          %v574 = vshrl.u32 %v573, 7
          %v575 = vsub.s32 %v572, %v574
          %v576 = vrot.slane %v561, %v575
          %v577 = vcombine.low %v569, %v576
          %v579 = vadd.f32 %v547, %v577
          %580 = vst [vmem:[%s260] sm:$0x3f] %v579
        $region52: #{tpu_custom_call.1} parent=31 // pred_fallthru
          _
        %s581 = sand.u32 %s121, 1
        %s582 = scalar_lea.sflag [#allocation5], %s581
        %s583 = sand.u32 %s121, 1
        %s584 = smul.addr %s583, 6
        %s585 = scalar_lea.vmem [#allocation9], %s584
        // Predicated region
        $region53: #{tpu_custom_call.1} parent=31 // pred_check
          %p586 = pneg %p131
        $region54: #{tpu_custom_call.1} parent=31 // pred_check_branch
          %588 = sbr.rel (%p586) target = $region56
        $region55: #{tpu_custom_call.1} parent=31 // pred_region
          %s589 = smul.u32 3, %s25
          %s591 = ssub.s32 96, 96
          %592 = vsyncadd %s582, %s591
          %s593 = smul.addr %s589, 32
          %s594 = scalar_lea.hbm %s3, %s593
          %s596 = sshll.u32 %s585, 4
          %s597 = int_to_ptr.vmem [resolvable:$true] %s596
          %599 = dma.vmem_to_hbm [thread:$0]  %s597, 96, %s594, %s582
        $region56: #{tpu_custom_call.1} parent=31 // pred_fallthru
          _
      $region32: #{tpu_custom_call.1} parent=5 // pred_fallthru
        _
      %p600 = scmp.le.s32.totalorder 2, %s16
      // Predicated region
      $region57: #{tpu_custom_call.1} parent=5 // pred_check
        %p601 = pneg %p600
      $region58: #{tpu_custom_call.1} parent=5 // pred_check_branch
        %603 = sbr.rel (%p601) target = $region60
      $region59: #{tpu_custom_call.1} parent=5 // pred_region
        %s604 = ssub.s32 %s16, 2
        // Predicated region
        $region61: #{tpu_custom_call.1} parent=59 // pred_check
          %p605 = pneg %p137
        $region62: #{tpu_custom_call.1} parent=59 // pred_check_branch
          %607 = sbr.rel (%p605) target = $region64
        $region63: #{tpu_custom_call.1} parent=59 // pred_region
          %s608 = sand.u32 %s122, 1
          %s609 = scalar_lea.sflag [#allocation5], %s608
          %s610 = sand.u32 %s122, 1
          %s611 = smul.addr %s610, 6
          %s612 = scalar_lea.vmem [#allocation9], %s611
          %613 = dma.done %s609, 96
        $region64: #{tpu_custom_call.1} parent=59 // pred_fallthru
          _
      $region60: #{tpu_custom_call.1} parent=5 // pred_fallthru
        _
    $region6: #{tpu_custom_call.1} parent=1 // loop_footer
      %s20 = sadd.s32 1, %s16
    $region7: #{tpu_custom_call.1} parent=1 // loop_footer_branch
      %15 = sbr.rel target = $region3
    $region8: #{tpu_custom_call.1} parent=1 // loop_exit
      _
    %614 = vsyncpa [#allocation4], 1
    %s615 = scalar_lea.sflag [#allocation4], 1
    %616 = vsyncpa %s615, 1
    %617 = vsyncpa [#allocation7], 1
    %s618 = scalar_lea.sflag [#allocation7], 1
    %619 = vsyncpa %s618, 1
    %620 = vsyncpa [#allocation5], 1
    %s621 = scalar_lea.sflag [#allocation5], 1
    %622 = vsyncpa %s621, 1

</llo_original>
